<compile_context>
chip_gen: v6e
topology: v6e:2x2x1
jax: 0.10.0
libtpu: 0.0.40
codegen_flags: <defaults>
</compile_context>

<pallas_src>
import math

import numpy as np
import jax
import jax.numpy as jnp
from jax.experimental import pallas as pl
from jax.experimental.pallas import tpu as pltpu

# LatencyModel default hyper-parameters
INPUT_DIM = 20
HIDDENS = (32, 64)
KERNELS = (3, 3)
DILATION = 3        # layer i uses dilation DILATION**i
CHUNK = 30          # chunk_length == sequence length (required by SelfAttention)
BATCH = 2
BN_EPS = 1e-5
# TODO(synk): BatchNorm1d is implemented in eval mode (running stats folded into the
# conv weights/shift); PyTorch training-mode batch statistics are not reproduced.
# TODO(synk): dropout (trace_dropout) is unused in the reference forward pass, so omitted.


def _causal_conv_bn_relu(x, w_flat, shift, kernel_size, dilation):
    """Causal dilated conv + folded BN + ReLU as a single im2col matmul.

    x: (T, Cin) f32.  w_flat: (K*Cin, Cout) with BN scale folded in.
    shift: (1, Cout) = conv_bias*bn_scale + bn_shift.
    Equivalent to Conv1d(pad=(K-1)*dil) -> BN(eval) -> ReLU -> Chomp((K-1)*dil).
    """
    T, Cin = x.shape
    pad = (kernel_size - 1) * dilation
    # Zero-pad once on the left (causal), then take K static tap slices.
    xp = jnp.concatenate([jnp.zeros((pad, Cin), jnp.float32), x], axis=0)  # (T+pad, Cin)
    taps = [xp[k * dilation:k * dilation + T, :] for k in range(kernel_size)]
    x_cat = jnp.concatenate(taps, axis=-1)                                 # (T, K*Cin)
    y = jnp.dot(x_cat, w_flat, preferred_element_type=jnp.float32) + shift
    return jnp.maximum(y, 0.0)                                             # ReLU


def latency_kernel(
    x_ref,
    w1_ref, sh1_ref,
    w2_ref, sh2_ref,
    aw_ref, ab_ref,
    out_ref,
):
    x = x_ref[0].astype(jnp.float32)                                   # (T, Cin)
    h = _causal_conv_bn_relu(x, w1_ref[...], sh1_ref[...], KERNELS[0], 1)         # (T, C1)
    h = _causal_conv_bn_relu(h, w2_ref[...], sh2_ref[...], KERNELS[1], DILATION)  # (T, C2)

    # SelfAttention: score[t] = tanh(<h[t], aw[t]> + ab[t]); out = sum_t score[t]*h[t]
    proj = jnp.sum(h * aw_ref[...], axis=-1, keepdims=True)            # (T, 1)
    score = jnp.tanh(proj + ab_ref[...])                               # (T, 1)
    # Weighted sum kept on VPU/XLU (sublane reduce): a contraction over T would need
    # a transposed-LHS matmul; this epilogue is a couple of vregs and off the MXU path.
    out_ref[0] = jnp.sum(score * h, axis=0, keepdims=True)             # (1, C2)


def latency_model_forward(x, kp):
    B, T, Cin = x.shape
    KC1, C1 = kp["w1f"].shape
    KC2, C2 = kp["w2f"].shape

    in_specs = [
        pl.BlockSpec((1, T, Cin), lambda i: (i, 0, 0)),   # per-batch x tile
        pl.BlockSpec((KC1, C1), lambda i: (0, 0)),        # folded conv1 weight (60, 32)
        pl.BlockSpec((1, C1), lambda i: (0, 0)),          # folded conv1 bias/shift
        pl.BlockSpec((KC2, C2), lambda i: (0, 0)),        # folded conv2 weight (96, 64)
        pl.BlockSpec((1, C2), lambda i: (0, 0)),          # folded conv2 bias/shift
        pl.BlockSpec((T, C2), lambda i: (0, 0)),          # attention weight
        pl.BlockSpec((T, 1), lambda i: (0, 0)),           # attention bias
    ]
    out = pl.pallas_call(
        latency_kernel,
        out_shape=jax.ShapeDtypeStruct((B, 1, C2), jnp.float32),
        grid=(B,),
        in_specs=in_specs,
        out_specs=pl.BlockSpec((1, 1, C2), lambda i: (i, 0, 0)),
        compiler_params=pltpu.CompilerParams(dimension_semantics=("parallel",)),
    )(x, kp["w1f"], kp["sh1"], kp["w2f"], kp["sh2"], kp["aw"], kp["ab"])
    return out[:, 0, :]                                                # (B, C2)


def init_params(key):
    """Builds PyTorch-equivalent parameters, then folds BN+bias offline for the kernel."""
    ks = jax.random.split(key, 9)
    f32 = jnp.float32

    # Conv1d #1: PyTorch layout (Cout, Cin, K), uniform(-1/sqrt(fan_in), +)
    fan1 = INPUT_DIM * KERNELS[0]
    w1_pt = jax.random.uniform(
        ks[0], (HIDDENS[0], INPUT_DIM, KERNELS[0]), minval=-1.0, maxval=1.0
    ) / math.sqrt(fan1)
    b1 = jax.random.uniform(ks[1], (HIDDENS[0],), minval=-1.0, maxval=1.0) / math.sqrt(fan1)

    # Conv1d #2
    fan2 = HIDDENS[0] * KERNELS[1]
    w2_pt = jax.random.uniform(
        ks[2], (HIDDENS[1], HIDDENS[0], KERNELS[1]), minval=-1.0, maxval=1.0
    ) / math.sqrt(fan2)
    b2 = jax.random.uniform(ks[3], (HIDDENS[1],), minval=-1.0, maxval=1.0) / math.sqrt(fan2)

    # BatchNorm1d (eval): gamma/beta random-ish, running_mean=0, running_var=1
    g1 = 1.0 + 0.1 * jax.random.normal(ks[4], (HIDDENS[0],))
    be1 = 0.1 * jax.random.normal(ks[5], (HIDDENS[0],))
    g2 = 1.0 + 0.1 * jax.random.normal(ks[6], (HIDDENS[1],))
    be2 = 0.1 * jax.random.normal(ks[7], (HIDDENS[1],))
    rm1, rv1 = jnp.zeros((HIDDENS[0],)), jnp.ones((HIDDENS[0],))
    rm2, rv2 = jnp.zeros((HIDDENS[1],)), jnp.ones((HIDDENS[1],))

    # SelfAttention: glorot-uniform atten_w (seq, D, 1), atten_bias filled with 0
    stdv = math.sqrt(6.0 / (HIDDENS[1] + 1))
    aw = jax.random.uniform(ks[8], (CHUNK, HIDDENS[1], 1), minval=-stdv, maxval=stdv)
    ab = jnp.zeros((CHUNK, 1, 1))

    # ---- offline folding: BN scale into weights, conv bias into BN shift ----
    s1 = g1 / jnp.sqrt(rv1 + BN_EPS)
    t1 = be1 - rm1 * s1
    s2 = g2 / jnp.sqrt(rv2 + BN_EPS)
    t2 = be2 - rm2 * s2

    w1 = jnp.transpose(w1_pt, (2, 1, 0))                      # (K, Cin, C1)
    w2 = jnp.transpose(w2_pt, (2, 1, 0))                      # (K, C1, C2)
    w1f = (w1 * s1[None, None, :]).reshape(KERNELS[0] * INPUT_DIM, HIDDENS[0])
    w2f = (w2 * s2[None, None, :]).reshape(KERNELS[1] * HIDDENS[0], HIDDENS[1])
    sh1 = (b1 * s1 + t1).reshape(1, -1)
    sh2 = (b2 * s2 + t2).reshape(1, -1)

    kernel_params = dict(
        w1f=w1f.astype(f32), sh1=sh1.astype(f32),
        w2f=w2f.astype(f32), sh2=sh2.astype(f32),
        aw=aw[:, :, 0].astype(f32),                           # (T, C2)
        ab=ab[:, :, 0].astype(f32),                           # (T, 1)
    )
    ref_params = dict(
        w1_pt=w1_pt.astype(f32), b1=b1.astype(f32),
        g1=g1.astype(f32), be1=be1.astype(f32), rm1=rm1.astype(f32), rv1=rv1.astype(f32),
        w2_pt=w2_pt.astype(f32), b2=b2.astype(f32),
        g2=g2.astype(f32), be2=be2.astype(f32), rm2=rm2.astype(f32), rv2=rv2.astype(f32),
        aw=aw[:, :, 0].astype(f32), ab=ab[:, 0, 0].astype(f32),
    )
    return kernel_params, ref_params


def reference_forward(x, rp):
    """Pure-JAX reference using the UNFUSED (PyTorch-equivalent) parameters."""

    def conv_bn_relu(h, w_pt, b, g, be, rm, rv, dil):
        B, T, _ = h.shape
        Cout, _, K = w_pt.shape
        acc = jnp.zeros((B, T, Cout), jnp.float32)
        for k in range(K):
            sh = (K - 1 - k) * dil
            hs = jnp.pad(h, ((0, 0), (sh, 0), (0, 0)))[:, :T, :]
            acc = acc + jnp.einsum("btc,oc->bto", hs, w_pt[:, :, k])
        y = acc + b
        y = (y - rm) / jnp.sqrt(rv + BN_EPS) * g + be          # BatchNorm1d (eval)
        return jnp.maximum(y, 0.0)

    h = conv_bn_relu(x, rp["w1_pt"], rp["b1"], rp["g1"], rp["be1"], rp["rm1"], rp["rv1"], 1)
    h = conv_bn_relu(h, rp["w2_pt"], rp["b2"], rp["g2"], rp["be2"], rp["rm2"], rp["rv2"],
                     DILATION)
    proj = jnp.einsum("btd,td->bt", h, rp["aw"]) + rp["ab"][None, :]
    score = jnp.tanh(proj)                                     # (B, T)
    return jnp.einsum("bt,btd->bd", score, h)                  # (B, D)


if __name__ == "__main__":
    key = jax.random.PRNGKey(0)
    kx, kp = jax.random.split(key)
    # x matches the PyTorch forward input: (batch, chunk_length, input_dim)
    x = jax.random.normal(kx, (BATCH, CHUNK, INPUT_DIM), dtype=jnp.float32)
    kernel_params, ref_params = init_params(kp)

    out = latency_model_forward(x, kernel_params)
    out = jax.block_until_ready(out)

    ref = reference_forward(x, ref_params)
    assert out.shape == (BATCH, HIDDENS[-1])
    np.testing.assert_allclose(np.asarray(out), np.asarray(ref), rtol=1e-4, atol=1e-4)
    print("KERNEL_OK")
</pallas_src>

<mosaic_0001>
module attributes {stable_mosaic.version = 11 : i64} {
  func.func @latency_kernel(%arg0: i32, %arg1: memref<1x30x20xf32, #tpu.memory_space<vmem>>, %arg2: memref<60x32xf32, #tpu.memory_space<vmem>>, %arg3: memref<1x32xf32, #tpu.memory_space<vmem>>, %arg4: memref<96x64xf32, #tpu.memory_space<vmem>>, %arg5: memref<1x64xf32, #tpu.memory_space<vmem>>, %arg6: memref<30x64xf32, #tpu.memory_space<vmem>>, %arg7: memref<30x1xf32, #tpu.memory_space<vmem>>, %arg8: memref<1x1x64xf32, #tpu.memory_space<vmem>>) attributes {dimension_semantics = [#tpu.dimension_semantics<parallel>], iteration_bounds = array<i64: 2>, scalar_prefetch = 0 : i64, scratch_operands = 0 : i64, tpu.core_type = #tpu.core_type<tc>, window_params = [{transform_indices = @transform_0, window_bounds = array<i64: 1, 30, 20>}, {pipeline_mode = #tpu.pipeline_mode<synchronous>, transform_indices = @transform_1, window_bounds = array<i64: 60, 32>}, {pipeline_mode = #tpu.pipeline_mode<synchronous>, transform_indices = @transform_2, window_bounds = array<i64: 1, 32>}, {pipeline_mode = #tpu.pipeline_mode<synchronous>, transform_indices = @transform_3, window_bounds = array<i64: 96, 64>}, {pipeline_mode = #tpu.pipeline_mode<synchronous>, transform_indices = @transform_4, window_bounds = array<i64: 1, 64>}, {pipeline_mode = #tpu.pipeline_mode<synchronous>, transform_indices = @transform_5, window_bounds = array<i64: 30, 64>}, {pipeline_mode = #tpu.pipeline_mode<synchronous>, transform_indices = @transform_6, window_bounds = array<i64: 30, 1>}, {transform_indices = @transform_7, window_bounds = array<i64: 1, 1, 64>}]} {
    %c0 = arith.constant 0 : index
    %c0_0 = arith.constant 0 : index
    %c0_1 = arith.constant 0 : index
    %0 = vector.load %arg1[%c0, %c0_0, %c0_1] : memref<1x30x20xf32, #tpu.memory_space<vmem>>, vector<1x30x20xf32>
    %1 = vector.shape_cast %0 : vector<1x30x20xf32> to vector<30x20xf32>
    %c0_2 = arith.constant 0 : index
    %c0_3 = arith.constant 0 : index
    %2 = vector.load %arg2[%c0_2, %c0_3] : memref<60x32xf32, #tpu.memory_space<vmem>>, vector<60x32xf32>
    %c0_4 = arith.constant 0 : index
    %c0_5 = arith.constant 0 : index
    %3 = vector.load %arg3[%c0_4, %c0_5] : memref<1x32xf32, #tpu.memory_space<vmem>>, vector<1x32xf32>
    %cst = arith.constant 0.000000e+00 : f32
    %4 = vector.broadcast %cst : f32 to vector<2x20xf32>
    %5 = tpu.concatenate %4, %1 in 0 : vector<2x20xf32>, vector<30x20xf32> -> vector<32x20xf32>
    %6 = vector.extract_strided_slice %5 {offsets = [0, 0], sizes = [30, 20], strides = [1, 1]} : vector<32x20xf32> to vector<30x20xf32>
    %7 = vector.extract_strided_slice %5 {offsets = [1, 0], sizes = [30, 20], strides = [1, 1]} : vector<32x20xf32> to vector<30x20xf32>
    %8 = vector.extract_strided_slice %5 {offsets = [2, 0], sizes = [30, 20], strides = [1, 1]} : vector<32x20xf32> to vector<30x20xf32>
    %9 = tpu.concatenate %6, %7, %8 in 1 : vector<30x20xf32>, vector<30x20xf32>, vector<30x20xf32> -> vector<30x60xf32>
    %cst_6 = arith.constant dense<0.000000e+00> : vector<30x32xf32>
    %10 = tpu.matmul %9, %2, %cst_6 {dimension_numbers = #tpu.dot_dimension_numbers<[1], [0], [0], [1], [0, 0, 1, 1], [], []>} : vector<30x60xf32>, vector<60x32xf32>, vector<30x32xf32> -> vector<30x32xf32>
    %11 = vector.broadcast %3 : vector<1x32xf32> to vector<30x32xf32>
    %12 = arith.addf %10, %11 : vector<30x32xf32>
    %cst_7 = arith.constant 0.000000e+00 : f32
    %13 = vector.broadcast %cst_7 : f32 to vector<30x32xf32>
    %14 = arith.maximumf %12, %13 : vector<30x32xf32>
    %c0_8 = arith.constant 0 : index
    %c0_9 = arith.constant 0 : index
    %15 = vector.load %arg4[%c0_8, %c0_9] : memref<96x64xf32, #tpu.memory_space<vmem>>, vector<96x64xf32>
    %c0_10 = arith.constant 0 : index
    %c0_11 = arith.constant 0 : index
    %16 = vector.load %arg5[%c0_10, %c0_11] : memref<1x64xf32, #tpu.memory_space<vmem>>, vector<1x64xf32>
    %cst_12 = arith.constant 0.000000e+00 : f32
    %17 = vector.broadcast %cst_12 : f32 to vector<6x32xf32>
    %18 = tpu.concatenate %17, %14 in 0 : vector<6x32xf32>, vector<30x32xf32> -> vector<36x32xf32>
    %19 = vector.extract_strided_slice %18 {offsets = [0, 0], sizes = [30, 32], strides = [1, 1]} : vector<36x32xf32> to vector<30x32xf32>
    %20 = vector.extract_strided_slice %18 {offsets = [3, 0], sizes = [30, 32], strides = [1, 1]} : vector<36x32xf32> to vector<30x32xf32>
    %21 = vector.extract_strided_slice %18 {offsets = [6, 0], sizes = [30, 32], strides = [1, 1]} : vector<36x32xf32> to vector<30x32xf32>
    %22 = tpu.concatenate %19, %20, %21 in 1 : vector<30x32xf32>, vector<30x32xf32>, vector<30x32xf32> -> vector<30x96xf32>
    %cst_13 = arith.constant dense<0.000000e+00> : vector<30x64xf32>
    %23 = tpu.matmul %22, %15, %cst_13 {dimension_numbers = #tpu.dot_dimension_numbers<[1], [0], [0], [1], [0, 0, 1, 1], [], []>} : vector<30x96xf32>, vector<96x64xf32>, vector<30x64xf32> -> vector<30x64xf32>
    %24 = vector.broadcast %16 : vector<1x64xf32> to vector<30x64xf32>
    %25 = arith.addf %23, %24 : vector<30x64xf32>
    %cst_14 = arith.constant 0.000000e+00 : f32
    %26 = vector.broadcast %cst_14 : f32 to vector<30x64xf32>
    %27 = arith.maximumf %25, %26 : vector<30x64xf32>
    %c0_15 = arith.constant 0 : index
    %c0_16 = arith.constant 0 : index
    %28 = vector.load %arg6[%c0_15, %c0_16] : memref<30x64xf32, #tpu.memory_space<vmem>>, vector<30x64xf32>
    %29 = arith.mulf %27, %28 : vector<30x64xf32>
    %cst_17 = arith.constant dense<0.000000e+00> : vector<30xf32>
    %30 = vector.multi_reduction <add>, %29, %cst_17 [1] : vector<30x64xf32> to vector<30xf32>
    %31 = vector.shape_cast %30 : vector<30xf32> to vector<30x1xf32>
    %c0_18 = arith.constant 0 : index
    %c0_19 = arith.constant 0 : index
    %32 = vector.load %arg7[%c0_18, %c0_19] : memref<30x1xf32, #tpu.memory_space<vmem>>, vector<30x1xf32>
    %33 = arith.addf %31, %32 : vector<30x1xf32>
    %34 = math.tanh %33 : vector<30x1xf32>
    %35 = vector.broadcast %34 : vector<30x1xf32> to vector<30x64xf32>
    %36 = arith.mulf %35, %27 : vector<30x64xf32>
    %cst_20 = arith.constant dense<0.000000e+00> : vector<64xf32>
    %37 = vector.multi_reduction <add>, %36, %cst_20 [0] : vector<30x64xf32> to vector<64xf32>
    %38 = vector.shape_cast %37 : vector<64xf32> to vector<1x64xf32>
    %c0_21 = arith.constant 0 : index
    %c0_22 = arith.constant 0 : index
    %c0_23 = arith.constant 0 : index
    %39 = vector.load %arg8[%c0_21, %c0_22, %c0_23] : memref<1x1x64xf32, #tpu.memory_space<vmem>>, vector<1x1x64xf32>
    %40 = vector.shape_cast %39 : vector<1x1x64xf32> to vector<1x64xf32>
    %41 = vector.shape_cast %38 : vector<1x64xf32> to vector<1x1x64xf32>
    tpu.vector_store %arg8[%c0_21, %c0_22, %c0_23], %41 {strides = array<i32>} : memref<1x1x64xf32, #tpu.memory_space<vmem>>, vector<1x1x64xf32>,
    return
  }
  func.func @transform_0(%arg0: i32) -> (i32, i32, i32) {
    %c0_i32 = arith.constant 0 : i32
    %c0_i32_0 = arith.constant 0 : i32
    %c0_i32_1 = arith.constant 0 : i32
    return %arg0, %c0_i32, %c0_i32_0 : i32, i32, i32
  }
  func.func @transform_1(%arg0: i32) -> (i32, i32) {
    %c0_i32 = arith.constant 0 : i32
    %c0_i32_0 = arith.constant 0 : i32
    %c0_i32_1 = arith.constant 0 : i32
    return %c0_i32, %c0_i32_0 : i32, i32
  }
  func.func @transform_2(%arg0: i32) -> (i32, i32) {
    %c0_i32 = arith.constant 0 : i32
    %c0_i32_0 = arith.constant 0 : i32
    %c0_i32_1 = arith.constant 0 : i32
    return %c0_i32, %c0_i32_0 : i32, i32
  }
  func.func @transform_3(%arg0: i32) -> (i32, i32) {
    %c0_i32 = arith.constant 0 : i32
    %c0_i32_0 = arith.constant 0 : i32
    %c0_i32_1 = arith.constant 0 : i32
    return %c0_i32, %c0_i32_0 : i32, i32
  }
  func.func @transform_4(%arg0: i32) -> (i32, i32) {
    %c0_i32 = arith.constant 0 : i32
    %c0_i32_0 = arith.constant 0 : i32
    %c0_i32_1 = arith.constant 0 : i32
    return %c0_i32, %c0_i32_0 : i32, i32
  }
  func.func @transform_5(%arg0: i32) -> (i32, i32) {
    %c0_i32 = arith.constant 0 : i32
    %c0_i32_0 = arith.constant 0 : i32
    %c0_i32_1 = arith.constant 0 : i32
    return %c0_i32, %c0_i32_0 : i32, i32
  }
  func.func @transform_6(%arg0: i32) -> (i32, i32) {
    %c0_i32 = arith.constant 0 : i32
    %c0_i32_0 = arith.constant 0 : i32
    %c0_i32_1 = arith.constant 0 : i32
    return %c0_i32, %c0_i32_0 : i32, i32
  }
  func.func @transform_7(%arg0: i32) -> (i32, i32, i32) {
    %c0_i32 = arith.constant 0 : i32
    %c0_i32_0 = arith.constant 0 : i32
    %c0_i32_1 = arith.constant 0 : i32
    return %arg0, %c0_i32, %c0_i32_0 : i32, i32, i32
  }
}

</mosaic_0001>

<llo_original>
// kernel: tpu_custom_call.1
$region0: #{tpu_custom_call.1}
  #allocation0 [shape = 'u32[]', space=smem, size = 0x4, offset = 0x4, fixed_abs, tag = 'smem constant byte address 0x4 - core index']
  #allocation1 [shape = 'u32[144,128]{1,0:T(1,128)}', space=vmem, size = 0x12000, scoped, tag = 'internal scratch']
  %s0 = inlined_call_operand.vmem [shape: f32[2,30,20], index: 0, kind: input, shape index: {}]
  %s1 = inlined_call_operand.vmem [shape: f32[60,32], index: 1, kind: input, shape index: {}]
  %s2 = inlined_call_operand.vmem [shape: f32[1,32], index: 2, kind: input, shape index: {}]
  %s3 = inlined_call_operand.vmem [shape: f32[96,64], index: 3, kind: input, shape index: {}]
  %s4 = inlined_call_operand.vmem [shape: f32[1,64], index: 4, kind: input, shape index: {}]
  %s5 = inlined_call_operand.vmem [shape: f32[30,64], index: 5, kind: input, shape index: {}]
  %s6 = inlined_call_operand.vmem [shape: f32[30,1], index: 6, kind: input, shape index: {}]
  %s7 = inlined_call_operand.hbm [shape: f32[2,1,64], index: 7, kind: output, shape index: {}]
  %s8 = sld [smem:[#allocation0]]
  $region61: #{tpu_custom_call.1} parent=0
    _
  %s10 = ssub.s32 1, %s8
  %s11 = scalar_select 0, %s10, %s8
  $region1: #{tpu_custom_call.1} parent=0
    #allocation2 [shape = 'u8[1024]{0}', space=vmem, size = 0x400, scoped, tag = 'output window, operand 0']
    #allocation3 [shape = 's32[2]{0}', space=sflag, size = 0x8, scoped, tag = 'scoped memory for tpu_custom_call.1']
    %12 = vsyncpa [#allocation3], 0
    %s13 = scalar_lea.sflag [#allocation3], 1
    %14 = vsyncpa %s13, 0
    loop: start=0, step=1, limit=4
    $region2: #{tpu_custom_call.1} parent=1 // loop_pre_header
      _
    $region3: #{tpu_custom_call.1} parent=1 // loop_header
      %s16 = sphi 0, %s20
      %p17 = scmp.ge.s32.totalorder %s16, 4
      %s26 = sphi 0, %s28
      %s29 = sphi 0, %s26
      %s30 = sphi 0, %s29
      %s46 = sphi 0, %s30
      %s50 = sphi 0, %s50
      %s52 = sphi 0, %s50
      %s53 = sphi 0, %s52
      %s67 = sphi 0, %s53
      %s71 = sphi 0, %s71
      %s73 = sphi 0, %s71
      %s74 = sphi 0, %s73
      %s88 = sphi 0, %s74
      %s92 = sphi 0, %s92
      %s94 = sphi 0, %s92
      %s95 = sphi 0, %s94
      %s109 = sphi 0, %s95
      %s113 = sphi 0, %s113
      %s115 = sphi 0, %s113
      %s116 = sphi 0, %s115
      %s130 = sphi 0, %s116
      %s134 = sphi 0, %s134
      %s136 = sphi 0, %s134
      %s137 = sphi 0, %s136
      %s151 = sphi 0, %s137
      %s155 = sphi 0, %s155
      %s157 = sphi 0, %s155
      %s158 = sphi 0, %s157
      %s172 = sphi 0, %s158
      %s178 = sphi 0, %s180
      %s181 = sphi 0, %s178
      %s182 = sphi 0, %s181
      %s198 = sphi 0, %s182
    $region4: #{tpu_custom_call.1} parent=1 // loop_header_branch
      %19 = sbr.rel (%p17) target = $region8
    $region5: #{tpu_custom_call.1} parent=1 // loop_body
      %s21 = ssub.s32 %s16, 1
      %s22 = ssub.s32 %s16, 2
      %s23 = sadd.s32 %s16, 1
      %s24 = ssub.s32 %s16, %s23
      %p25 = scmp.eq.s32.totalorder %s24, 0
      %s27 = sadd.s32 %s26, 1
      %s28 = scalar_select %p25, %s26, %s27
      %p31 = pneg %p25
      %p32 = scmp.eq.s32.totalorder %s16, 1
      %p33 = por %p31, %p32
      %p34 = scmp.ne.s32.totalorder %s26, %s29
      %p35 = scmp.eq.s32.totalorder %s16, 0
      %p36 = por %p34, %p35
      %p37 = scmp.ne.s32.totalorder %s26, %s29
      %p38 = scmp.eq.s32.totalorder %s21, 1
      %p39 = por %p37, %p38
      %p40 = scmp.ne.s32.totalorder %s29, %s30
      %p41 = scmp.eq.s32.totalorder %s21, 0
      %p42 = por %p40, %p41
      %p43 = scmp.ne.s32.totalorder %s29, %s30
      %p44 = scmp.eq.s32.totalorder %s22, 1
      %p45 = por %p43, %p44
      %p47 = scmp.ne.s32.totalorder %s30, %s46
      %p48 = scmp.eq.s32.totalorder %s22, 0
      %p49 = por %p47, %p48
      %s51 = sadd.s32 %s50, 1
      %p54 = scmp.eq.s32.totalorder %s16, 1
      %p55 = scmp.ne.s32.totalorder %s50, %s52
      %p56 = scmp.eq.s32.totalorder %s16, 0
      %p57 = por %p55, %p56
      %p58 = scmp.ne.s32.totalorder %s50, %s52
      %p59 = scmp.eq.s32.totalorder %s21, 1
      %p60 = por %p58, %p59
      %p61 = scmp.ne.s32.totalorder %s52, %s53
      %p62 = scmp.eq.s32.totalorder %s21, 0
      %p63 = por %p61, %p62
      %p64 = scmp.ne.s32.totalorder %s52, %s53
      %p65 = scmp.eq.s32.totalorder %s22, 1
      %p66 = por %p64, %p65
      %p68 = scmp.ne.s32.totalorder %s53, %s67
      %p69 = scmp.eq.s32.totalorder %s22, 0
      %p70 = por %p68, %p69
      %s72 = sadd.s32 %s71, 1
      %p75 = scmp.eq.s32.totalorder %s16, 1
      %p76 = scmp.ne.s32.totalorder %s71, %s73
      %p77 = scmp.eq.s32.totalorder %s16, 0
      %p78 = por %p76, %p77
      %p79 = scmp.ne.s32.totalorder %s71, %s73
      %p80 = scmp.eq.s32.totalorder %s21, 1
      %p81 = por %p79, %p80
      %p82 = scmp.ne.s32.totalorder %s73, %s74
      %p83 = scmp.eq.s32.totalorder %s21, 0
      %p84 = por %p82, %p83
      %p85 = scmp.ne.s32.totalorder %s73, %s74
      %p86 = scmp.eq.s32.totalorder %s22, 1
      %p87 = por %p85, %p86
      %p89 = scmp.ne.s32.totalorder %s74, %s88
      %p90 = scmp.eq.s32.totalorder %s22, 0
      %p91 = por %p89, %p90
      %s93 = sadd.s32 %s92, 1
      %p96 = scmp.eq.s32.totalorder %s16, 1
      %p97 = scmp.ne.s32.totalorder %s92, %s94
      %p98 = scmp.eq.s32.totalorder %s16, 0
      %p99 = por %p97, %p98
      %p100 = scmp.ne.s32.totalorder %s92, %s94
      %p101 = scmp.eq.s32.totalorder %s21, 1
      %p102 = por %p100, %p101
      %p103 = scmp.ne.s32.totalorder %s94, %s95
      %p104 = scmp.eq.s32.totalorder %s21, 0
      %p105 = por %p103, %p104
      %p106 = scmp.ne.s32.totalorder %s94, %s95
      %p107 = scmp.eq.s32.totalorder %s22, 1
      %p108 = por %p106, %p107
      %p110 = scmp.ne.s32.totalorder %s95, %s109
      %p111 = scmp.eq.s32.totalorder %s22, 0
      %p112 = por %p110, %p111
      %s114 = sadd.s32 %s113, 1
      %p117 = scmp.eq.s32.totalorder %s16, 1
      %p118 = scmp.ne.s32.totalorder %s113, %s115
      %p119 = scmp.eq.s32.totalorder %s16, 0
      %p120 = por %p118, %p119
      %p121 = scmp.ne.s32.totalorder %s113, %s115
      %p122 = scmp.eq.s32.totalorder %s21, 1
      %p123 = por %p121, %p122
      %p124 = scmp.ne.s32.totalorder %s115, %s116
      %p125 = scmp.eq.s32.totalorder %s21, 0
      %p126 = por %p124, %p125
      %p127 = scmp.ne.s32.totalorder %s115, %s116
      %p128 = scmp.eq.s32.totalorder %s22, 1
      %p129 = por %p127, %p128
      %p131 = scmp.ne.s32.totalorder %s116, %s130
      %p132 = scmp.eq.s32.totalorder %s22, 0
      %p133 = por %p131, %p132
      %s135 = sadd.s32 %s134, 1
      %p138 = scmp.eq.s32.totalorder %s16, 1
      %p139 = scmp.ne.s32.totalorder %s134, %s136
      %p140 = scmp.eq.s32.totalorder %s16, 0
      %p141 = por %p139, %p140
      %p142 = scmp.ne.s32.totalorder %s134, %s136
      %p143 = scmp.eq.s32.totalorder %s21, 1
      %p144 = por %p142, %p143
      %p145 = scmp.ne.s32.totalorder %s136, %s137
      %p146 = scmp.eq.s32.totalorder %s21, 0
      %p147 = por %p145, %p146
      %p148 = scmp.ne.s32.totalorder %s136, %s137
      %p149 = scmp.eq.s32.totalorder %s22, 1
      %p150 = por %p148, %p149
      %p152 = scmp.ne.s32.totalorder %s137, %s151
      %p153 = scmp.eq.s32.totalorder %s22, 0
      %p154 = por %p152, %p153
      %s156 = sadd.s32 %s155, 1
      %p159 = scmp.eq.s32.totalorder %s16, 1
      %p160 = scmp.ne.s32.totalorder %s155, %s157
      %p161 = scmp.eq.s32.totalorder %s16, 0
      %p162 = por %p160, %p161
      %p163 = scmp.ne.s32.totalorder %s155, %s157
      %p164 = scmp.eq.s32.totalorder %s21, 1
      %p165 = por %p163, %p164
      %p166 = scmp.ne.s32.totalorder %s157, %s158
      %p167 = scmp.eq.s32.totalorder %s21, 0
      %p168 = por %p166, %p167
      %p169 = scmp.ne.s32.totalorder %s157, %s158
      %p170 = scmp.eq.s32.totalorder %s22, 1
      %p171 = por %p169, %p170
      %p173 = scmp.ne.s32.totalorder %s158, %s172
      %p174 = scmp.eq.s32.totalorder %s22, 0
      %p175 = por %p173, %p174
      %s176 = ssub.s32 %s16, %s23
      %p177 = scmp.eq.s32.totalorder %s176, 0
      %s179 = sadd.s32 %s178, 1
      %s180 = scalar_select %p177, %s178, %s179
      %p183 = pneg %p177
      %p184 = scmp.eq.s32.totalorder %s16, 1
      %p185 = por %p183, %p184
      %p186 = scmp.ne.s32.totalorder %s178, %s181
      %p187 = scmp.eq.s32.totalorder %s16, 0
      %p188 = por %p186, %p187
      %p189 = scmp.ne.s32.totalorder %s178, %s181
      %p190 = scmp.eq.s32.totalorder %s21, 1
      %p191 = por %p189, %p190
      %p192 = scmp.ne.s32.totalorder %s181, %s182
      %p193 = scmp.eq.s32.totalorder %s21, 0
      %p194 = por %p192, %p193
      %p195 = scmp.ne.s32.totalorder %s181, %s182
      %p196 = scmp.eq.s32.totalorder %s22, 1
      %p197 = por %p195, %p196
      %p199 = scmp.ne.s32.totalorder %s182, %s198
      %p200 = scmp.eq.s32.totalorder %s22, 0
      %p201 = por %p199, %p200
      %p202 = scmp.le.s32.totalorder 1, %s16
      %p203 = scmp.lt.s32.totalorder %s16, 3
      %p204 = pnand %p202, %p203
      %p205 = pneg %p204
      // Predicated region
      $region9: #{tpu_custom_call.1} parent=5 // pred_check
        _
      $region10: #{tpu_custom_call.1} parent=5 // pred_check_branch
        %207 = sbr.rel (%p204) target = $region12
      $region11: #{tpu_custom_call.1} parent=5 // pred_region
        %s208 = ssub.s32 %s16, 1
        // Predicated region
        $region13: #{tpu_custom_call.1} parent=11 // pred_check
          %p209 = pneg %p63
        $region14: #{tpu_custom_call.1} parent=11 // pred_check_branch
          %211 = sbr.rel (%p209) target = $region16
        $region15: #{tpu_custom_call.1} parent=11 // pred_region
          _
        $region16: #{tpu_custom_call.1} parent=11 // pred_fallthru
          _
        // Predicated region
        $region17: #{tpu_custom_call.1} parent=11 // pred_check
          %p212 = pneg %p84
        $region18: #{tpu_custom_call.1} parent=11 // pred_check_branch
          %214 = sbr.rel (%p212) target = $region20
        $region19: #{tpu_custom_call.1} parent=11 // pred_region
          _
        $region20: #{tpu_custom_call.1} parent=11 // pred_fallthru
          _
        // Predicated region
        $region21: #{tpu_custom_call.1} parent=11 // pred_check
          %p215 = pneg %p105
        $region22: #{tpu_custom_call.1} parent=11 // pred_check_branch
          %217 = sbr.rel (%p215) target = $region24
        $region23: #{tpu_custom_call.1} parent=11 // pred_region
          _
        $region24: #{tpu_custom_call.1} parent=11 // pred_fallthru
          _
        // Predicated region
        $region25: #{tpu_custom_call.1} parent=11 // pred_check
          %p218 = pneg %p126
        $region26: #{tpu_custom_call.1} parent=11 // pred_check_branch
          %220 = sbr.rel (%p218) target = $region28
        $region27: #{tpu_custom_call.1} parent=11 // pred_region
          _
        $region28: #{tpu_custom_call.1} parent=11 // pred_fallthru
          _
        // Predicated region
        $region29: #{tpu_custom_call.1} parent=11 // pred_check
          %p221 = pneg %p147
        $region30: #{tpu_custom_call.1} parent=11 // pred_check_branch
          %223 = sbr.rel (%p221) target = $region32
        $region31: #{tpu_custom_call.1} parent=11 // pred_region
          _
        $region32: #{tpu_custom_call.1} parent=11 // pred_fallthru
          _
        // Predicated region
        $region33: #{tpu_custom_call.1} parent=11 // pred_check
          %p224 = pneg %p168
        $region34: #{tpu_custom_call.1} parent=11 // pred_check_branch
          %226 = sbr.rel (%p224) target = $region36
        $region35: #{tpu_custom_call.1} parent=11 // pred_region
          _
        $region36: #{tpu_custom_call.1} parent=11 // pred_fallthru
          _
      $region12: #{tpu_custom_call.1} parent=5 // pred_fallthru
        _
      %p227 = scmp.lt.s32.totalorder %s16, 2
      // Predicated region
      $region37: #{tpu_custom_call.1} parent=5 // pred_check
        %p228 = pneg %p227
      $region38: #{tpu_custom_call.1} parent=5 // pred_check_branch
        %230 = sbr.rel (%p228) target = $region40
      $region39: #{tpu_custom_call.1} parent=5 // pred_region
        // Predicated region
        $region41: #{tpu_custom_call.1} parent=39 // pred_check
          %p231 = pneg %p36
        $region42: #{tpu_custom_call.1} parent=39 // pred_check_branch
          %233 = sbr.rel (%p231) target = $region44
        $region43: #{tpu_custom_call.1} parent=39 // pred_region
          %p234 = scmp.lt.s32.totalorder %s16, 1
          %s235 = scalar_select %p234, %s16, 1
          %s236 = smul.addr %s235, 4
          %s237 = smul.addr %s236, 8
          %s238 = scalar_lea.vmem %s0, %s237
        $region44: #{tpu_custom_call.1} parent=39 // pred_fallthru
          _
      $region40: #{tpu_custom_call.1} parent=5 // pred_fallthru
        _
      %p239 = scmp.le.s32.totalorder 1, %s16
      %p240 = scmp.lt.s32.totalorder %s16, 3
      %p241 = pnand %p239, %p240
      %p242 = pneg %p241
      // Predicated region
      $region45: #{tpu_custom_call.1} parent=5 // pred_check
        _
      $region46: #{tpu_custom_call.1} parent=5 // pred_check_branch
        %244 = sbr.rel (%p241) target = $region48
      $region47: #{tpu_custom_call.1} parent=5 // pred_region
        %s245 = ssub.s32 %s16, 1
        %p246 = scmp.lt.s32.totalorder %s21, 1
        %s247 = scalar_select %p246, %s21, 1
        %s248 = smul.addr %s247, 4
        %s249 = smul.addr %s248, 8
        %s250 = scalar_lea.vmem %s0, %s249
        %p251 = pneg %p42
        %p252 = pneg %p39
        %p253 = pneg %p63
        %p254 = pneg %p60
        %p255 = pneg %p84
        %p256 = pneg %p81
        %p257 = pneg %p105
        %p258 = pneg %p102
        %p259 = pneg %p126
        %p260 = pneg %p123
        %p261 = pneg %p147
        %p262 = pneg %p144
        %p263 = pneg %p168
        %p264 = pneg %p165
        %p265 = pneg %p194
        %p266 = pneg %p191
        %s267 = sand.u32 %s181, 1
        %s268 = scalar_lea.sflag [#allocation3], %s267
        %s269 = sand.u32 %s181, 1
        %s270 = scalar_lea.vmem [#allocation2], %s269
        %p271 = scmp.lt.s32.totalorder %s21, 1
        %s272 = scalar_select %p271, %s21, 1
        %s273 = smul.addr %s272, 4
        %s274 = smul.addr %s273, 8
        %s275 = scalar_lea.vmem %s0, %s274
        %v276 = vld [vmem:[%s275] sm:$0xff]
        %v277 = vld [vmem:[%s275 + $0x8] sm:$0xff]
        %v278 = vld [vmem:[%s275 + $0x10] sm:$0xff]
        %v279 = vld [vmem:[%s275 + $0x18] sm:$0x3f]
        %v280 = vld [vmem:[%s1] sm:$0xff]
        %v281 = vld [vmem:[%s1 + $0x8] sm:$0xff]
        %v282 = vld [vmem:[%s1 + $0x10] sm:$0xff]
        %v283 = vld [vmem:[%s1 + $0x18] sm:$0xff]
        %v284 = vld [vmem:[%s1 + $0x20] sm:$0xff]
        %v285 = vld [vmem:[%s1 + $0x28] sm:$0xff]
        %v286 = vld [vmem:[%s1 + $0x30] sm:$0xff]
        %v287 = vld [vmem:[%s1 + $0x38] sm:$0xf]
        %v288 = vld [vmem:[%s2] sm:$0x1]
        %vm293 = vcmask 1041408
        %v294 = vrot.slane %v276, 6
        %v295 = vrot.slane %v277, 6
        %v296 = vsel %vm293, %v294, %v295
        %v297 = vrot.slane %v278, 6
        %v298 = vsel %vm293, %v295, %v297
        %v299 = vrot.slane %v279, 6
        %v300 = vsel %vm293, %v297, %v299
        %v305 = vsel %vm293, 0.0, %v294
        %vm307 = vcmask 1046528
        %v308 = vrot.slane %v305, 1
        %v309 = vrot.slane %v296, 1
        %v310 = vsel %vm307, %v308, %v309
        %v311 = vrot.slane %v298, 1
        %v312 = vsel %vm307, %v309, %v311
        %v313 = vrot.slane %v300, 1
        %v314 = vsel %vm307, %v311, %v313
        %315 = vrot.lane.b32.xlu0 %v310, 20
        %v316 = vpop.permute.xlu0 %315
        %317 = vrot.lane.b32.xlu0 %v312, 20
        %v318 = vpop.permute.xlu0 %317
        %319 = vrot.lane.b32.xlu0 %v314, 20
        %v320 = vpop.permute.xlu0 %319
        %321 = vrot.lane.b32.xlu0 %v313, 20
        %v322 = vpop.permute.xlu0 %321
        %vm327 = vcmask 1045504
        %v328 = vrot.slane %v305, 2
        %v329 = vrot.slane %v296, 2
        %v330 = vsel %vm327, %v328, %v329
        %v331 = vrot.slane %v298, 2
        %v332 = vsel %vm327, %v329, %v331
        %v333 = vrot.slane %v300, 2
        %v334 = vsel %vm327, %v331, %v333
        %335 = vrot.lane.b32.xlu0 %v330, 40
        %v336 = vpop.permute.xlu0 %335
        %337 = vrot.lane.b32.xlu0 %v332, 40
        %v338 = vpop.permute.xlu0 %337
        %339 = vrot.lane.b32.xlu0 %v334, 40
        %v340 = vpop.permute.xlu0 %339
        %341 = vrot.lane.b32.xlu0 %v333, 40
        %v342 = vpop.permute.xlu0 %341
        %vm347 = vcmask 162816
        %v348 = vsel %vm347, %v305, %v316
        %v349 = vsel %vm347, %v296, %v318
        %v350 = vsel %vm347, %v298, %v320
        %v351 = vsel %vm347, %v300, %v322
        %vm352 = vcmask 326656
        %v353 = vsel %vm352, %v348, %v336
        %v354 = vsel %vm352, %v349, %v338
        %v355 = vsel %vm352, %v350, %v340
        %v356 = vsel %vm352, %v351, %v342
        %v358 = vlaneseq
        %v359 = vshrl.u32 %v358, 7
        %v360 = vsub.s32 0, %v359
        %v361 = vrot.slane %v288, %v360
        %vm363 = vcmask 490496
        %v365 = vsel %vm363, %v353, 0
        %v368 = vsel %vm363, %v354, 0
        %v371 = vsel %vm363, %v355, 0
        %v374 = vsel %vm363, %v356, 0
        %vm376 = vcmask 1043456
        %v378 = vsel %vm376, %v287, 0
        %380 = vmatprep.subr.mxu0 0.0
        %381 = vmatpush1.msra.mxu0 0.0
        %382 = vmatprep.subr.mxu0 0.0
        %383 = vmatpush1.msra.mxu0 0.0
        %384 = vmatprep.subr.mxu0 0.0
        %385 = vmatpush1.msra.mxu0 0.0
        %386 = vmatprep.subr.mxu0 0.0
        %387 = vmatpush1.msra.mxu0 0.0
        %388 = vmatprep.subr.mxu0 0.0
        %389 = vmatpush1.msra.mxu0 0.0
        %390 = vmatprep.subr.mxu0 0.0
        %391 = vmatpush1.msra.mxu0 0.0
        %392 = vmatprep.subr.mxu0 0.0
        %393 = vmatpush1.msra.mxu0 0.0
        %394 = vmatprep.subr.mxu0 0.0
        %395 = vmatpush1.msra.mxu0 0.0
        %396 = vmatprep.subr.mxu0 0.0
        %397 = vmatpush1.msra.mxu0 %v378
        %398 = vmatprep.subr.mxu0 0.0
        %399 = vmatpush1.msra.mxu0 %v286
        %400 = vmatprep.subr.mxu0 0.0
        %401 = vmatpush1.msra.mxu0 %v285
        %402 = vmatprep.subr.mxu0 0.0
        %403 = vmatpush1.msra.mxu0 %v284
        %404 = vmatprep.subr.mxu0 0.0
        %405 = vmatpush1.msra.mxu0 %v283
        %406 = vmatprep.subr.mxu0 0.0
        %407 = vmatpush1.msra.mxu0 %v282
        %408 = vmatprep.subr.mxu0 0.0
        %409 = vmatpush1.msra.mxu0 %v281
        %410 = vmatprep.subr.mxu0 0.0
        %411 = vmatpush1.msra.mxu0 %v280
        %412 = vmatprep.subr.mxu0 0.0
        %413 = vmatpush2.msra.mxu0 0.0
        %414 = vmatprep.subr.mxu0 0.0
        %415 = vmatpush2.msra.mxu0 0.0
        %416 = vmatprep.subr.mxu0 0.0
        %417 = vmatpush2.msra.mxu0 0.0
        %418 = vmatprep.subr.mxu0 0.0
        %419 = vmatpush2.msra.mxu0 0.0
        %420 = vmatprep.subr.mxu0 0.0
        %421 = vmatpush2.msra.mxu0 0.0
        %422 = vmatprep.subr.mxu0 0.0
        %423 = vmatpush2.msra.mxu0 0.0
        %424 = vmatprep.subr.mxu0 0.0
        %425 = vmatpush2.msra.mxu0 0.0
        %426 = vmatprep.subr.mxu0 0.0
        %427 = vmatpush2.msra.mxu0 0.0
        %428 = vmatprep.subr.mxu0 0.0
        %429 = vmatpush2.msra.mxu0 0.0
        %430 = vmatprep.subr.mxu0 0.0
        %431 = vmatpush2.msra.mxu0 0.0
        %432 = vmatprep.subr.mxu0 0.0
        %433 = vmatpush2.msra.mxu0 0.0
        %434 = vmatprep.subr.mxu0 0.0
        %435 = vmatpush2.msra.mxu0 0.0
        %436 = vmatprep.subr.mxu0 0.0
        %437 = vmatpush2.msra.mxu0 0.0
        %438 = vmatprep.subr.mxu0 0.0
        %439 = vmatpush2.msra.mxu0 0.0
        %440 = vmatprep.subr.mxu0 0.0
        %441 = vmatpush2.msra.mxu0 0.0
        %442 = vmatprep.subr.mxu0 0.0
        %443 = vmatpush2.msra.mxu0 0.0
        %444 = vmatprep.mubr.f32.mxu0 0.0
        %445 = vmatmul.mubr.f32.gmra.mxu0 %v365
        %v446 = vpop.f32.mrf.mxu0
        %v447 = vadd.f32 %v361, %v446
        %v448 = vpop.f32.mrf.mxu0
        %449 = vmatprep.mubr.f32.mxu0 0.0
        %450 = vmatmul.mubr.f32.gmra.mxu0 %v368
        %v451 = vpop.f32.mrf.mxu0
        %v452 = vadd.f32 %v361, %v451
        %v453 = vpop.f32.mrf.mxu0
        %454 = vmatprep.mubr.f32.mxu0 0.0
        %455 = vmatmul.mubr.f32.gmra.mxu0 %v371
        %v456 = vpop.f32.mrf.mxu0
        %v457 = vadd.f32 %v361, %v456
        %v458 = vpop.f32.mrf.mxu0
        %459 = vmatprep.mubr.f32.mxu0 0.0
        %460 = vmatmul.mubr.f32.gmra.mxu0 %v374
        %v461 = vpop.f32.mrf.mxu0
        %v462 = vadd.f32 %v361, %v461
        %v463 = vpop.f32.mrf.mxu0
        %464 = vdwg.mxu0
        %v465 = vmax.f32 %v447, 0.0
        %v466 = vmax.f32 %v452, 0.0
        %v467 = vmax.f32 %v457, 0.0
        %v468 = vmax.f32 %v462, 0.0
        %v469 = vld [vmem:[%s3] sm:$0xff]
        %v470 = vld [vmem:[%s3 + $0x8] sm:$0xff]
        %v471 = vld [vmem:[%s3 + $0x10] sm:$0xff]
        %v472 = vld [vmem:[%s3 + $0x18] sm:$0xff]
        %v473 = vld [vmem:[%s3 + $0x20] sm:$0xff]
        %v474 = vld [vmem:[%s3 + $0x28] sm:$0xff]
        %v475 = vld [vmem:[%s3 + $0x30] sm:$0xff]
        %v476 = vld [vmem:[%s3 + $0x38] sm:$0xff]
        %v477 = vld [vmem:[%s3 + $0x40] sm:$0xff]
        %v478 = vld [vmem:[%s3 + $0x48] sm:$0xff]
        %v479 = vld [vmem:[%s3 + $0x50] sm:$0xff]
        %v480 = vld [vmem:[%s3 + $0x58] sm:$0xff]
        %v481 = vld [vmem:[%s4] sm:$0x1]
        %v486 = vrot.slane %v465, 2
        %v487 = vrot.slane %v466, 2
        %v488 = vsel %vm327, %v486, %v487
        %v489 = vrot.slane %v467, 2
        %v490 = vsel %vm327, %v487, %v489
        %v491 = vrot.slane %v468, 2
        %v492 = vsel %vm327, %v489, %v491
        %v497 = vsel %vm327, 0.0, %v486
        %vm499 = vcmask 1044480
        %v500 = vrot.slane %v497, 3
        %v501 = vrot.slane %v488, 3
        %v502 = vsel %vm499, %v500, %v501
        %v503 = vrot.slane %v490, 3
        %v504 = vsel %vm499, %v501, %v503
        %v505 = vrot.slane %v492, 3
        %v506 = vsel %vm499, %v503, %v505
        %v507 = vrot.slane %v491, 3
        %v508 = vsel %vm499, %v505, %v507
        %509 = vrot.lane.b32.xlu0 %v502, 32
        %v510 = vpop.permute.xlu0 %509
        %511 = vrot.lane.b32.xlu0 %v504, 32
        %v512 = vpop.permute.xlu0 %511
        %513 = vrot.lane.b32.xlu0 %v506, 32
        %v514 = vpop.permute.xlu0 %513
        %515 = vrot.lane.b32.xlu0 %v508, 32
        %v516 = vpop.permute.xlu0 %515
        %v521 = vrot.slane %v497, 6
        %v522 = vrot.slane %v488, 6
        %v523 = vsel %vm293, %v521, %v522
        %v524 = vrot.slane %v490, 6
        %v525 = vsel %vm293, %v522, %v524
        %v526 = vrot.slane %v492, 6
        %v527 = vsel %vm293, %v524, %v526
        %v528 = vrot.slane %v491, 6
        %v529 = vsel %vm293, %v526, %v528
        %530 = vrot.lane.b32.xlu0 %v523, 64
        %v531 = vpop.permute.xlu0 %530
        %532 = vrot.lane.b32.xlu0 %v525, 64
        %v533 = vpop.permute.xlu0 %532
        %534 = vrot.lane.b32.xlu0 %v527, 64
        %v535 = vpop.permute.xlu0 %534
        %536 = vrot.lane.b32.xlu0 %v529, 64
        %v537 = vpop.permute.xlu0 %536
        %vm542 = vcmask 261120
        %v543 = vsel %vm542, %v497, %v510
        %v544 = vsel %vm542, %v488, %v512
        %v545 = vsel %vm542, %v490, %v514
        %v546 = vsel %vm542, %v492, %v516
        %vm547 = vcmask 523264
        %v548 = vsel %vm547, %v543, %v531
        %v549 = vsel %vm547, %v544, %v533
        %v550 = vsel %vm547, %v545, %v535
        %v551 = vsel %vm547, %v546, %v537
        %v553 = vlaneseq
        %v554 = vshrl.u32 %v553, 7
        %v555 = vsub.s32 0, %v554
        %v556 = vrot.slane %v481, %v555
        %vm558 = vcmask 785408
        %v560 = vsel %vm558, %v548, 0
        %v563 = vsel %vm558, %v549, 0
        %v566 = vsel %vm558, %v550, 0
        %v569 = vsel %vm558, %v551, 0
        %571 = vmatprep.subr.mxu0 0.0
        %572 = vmatpush1.msra.mxu0 0.0
        %573 = vmatprep.subr.mxu0 0.0
        %574 = vmatpush1.msra.mxu0 0.0
        %575 = vmatprep.subr.mxu0 0.0
        %576 = vmatpush1.msra.mxu0 0.0
        %577 = vmatprep.subr.mxu0 0.0
        %578 = vmatpush1.msra.mxu0 0.0
        %579 = vmatprep.subr.mxu0 0.0
        %580 = vmatpush1.msra.mxu0 %v480
        %581 = vmatprep.subr.mxu0 0.0
        %582 = vmatpush1.msra.mxu0 %v479
        %583 = vmatprep.subr.mxu0 0.0
        %584 = vmatpush1.msra.mxu0 %v478
        %585 = vmatprep.subr.mxu0 0.0
        %586 = vmatpush1.msra.mxu0 %v477
        %587 = vmatprep.subr.mxu0 0.0
        %588 = vmatpush1.msra.mxu0 %v476
        %589 = vmatprep.subr.mxu0 0.0
        %590 = vmatpush1.msra.mxu0 %v475
        %591 = vmatprep.subr.mxu0 0.0
        %592 = vmatpush1.msra.mxu0 %v474
        %593 = vmatprep.subr.mxu0 0.0
        %594 = vmatpush1.msra.mxu0 %v473
        %595 = vmatprep.subr.mxu0 0.0
        %596 = vmatpush1.msra.mxu0 %v472
        %597 = vmatprep.subr.mxu0 0.0
        %598 = vmatpush1.msra.mxu0 %v471
        %599 = vmatprep.subr.mxu0 0.0
        %600 = vmatpush1.msra.mxu0 %v470
        %601 = vmatprep.subr.mxu0 0.0
        %602 = vmatpush1.msra.mxu0 %v469
        %603 = vmatprep.subr.mxu0 0.0
        %604 = vmatpush2.msra.mxu0 0.0
        %605 = vmatprep.subr.mxu0 0.0
        %606 = vmatpush2.msra.mxu0 0.0
        %607 = vmatprep.subr.mxu0 0.0
        %608 = vmatpush2.msra.mxu0 0.0
        %609 = vmatprep.subr.mxu0 0.0
        %610 = vmatpush2.msra.mxu0 0.0
        %611 = vmatprep.subr.mxu0 0.0
        %612 = vmatpush2.msra.mxu0 0.0
        %613 = vmatprep.subr.mxu0 0.0
        %614 = vmatpush2.msra.mxu0 0.0
        %615 = vmatprep.subr.mxu0 0.0
        %616 = vmatpush2.msra.mxu0 0.0
        %617 = vmatprep.subr.mxu0 0.0
        %618 = vmatpush2.msra.mxu0 0.0
        %619 = vmatprep.subr.mxu0 0.0
        %620 = vmatpush2.msra.mxu0 0.0
        %621 = vmatprep.subr.mxu0 0.0
        %622 = vmatpush2.msra.mxu0 0.0
        %623 = vmatprep.subr.mxu0 0.0
        %624 = vmatpush2.msra.mxu0 0.0
        %625 = vmatprep.subr.mxu0 0.0
        %626 = vmatpush2.msra.mxu0 0.0
        %627 = vmatprep.subr.mxu0 0.0
        %628 = vmatpush2.msra.mxu0 0.0
        %629 = vmatprep.subr.mxu0 0.0
        %630 = vmatpush2.msra.mxu0 0.0
        %631 = vmatprep.subr.mxu0 0.0
        %632 = vmatpush2.msra.mxu0 0.0
        %633 = vmatprep.subr.mxu0 0.0
        %634 = vmatpush2.msra.mxu0 0.0
        %635 = vmatprep.mubr.f32.mxu0 0.0
        %636 = vmatmul.mubr.f32.gmra.mxu0 %v560
        %v637 = vpop.f32.mrf.mxu0
        %v638 = vadd.f32 %v556, %v637
        %v639 = vpop.f32.mrf.mxu0
        %640 = vmatprep.mubr.f32.mxu0 0.0
        %641 = vmatmul.mubr.f32.gmra.mxu0 %v563
        %v642 = vpop.f32.mrf.mxu0
        %v643 = vadd.f32 %v556, %v642
        %v644 = vpop.f32.mrf.mxu0
        %645 = vmatprep.mubr.f32.mxu0 0.0
        %646 = vmatmul.mubr.f32.gmra.mxu0 %v566
        %v647 = vpop.f32.mrf.mxu0
        %v648 = vadd.f32 %v556, %v647
        %v649 = vpop.f32.mrf.mxu0
        %650 = vmatprep.mubr.f32.mxu0 0.0
        %651 = vmatmul.mubr.f32.gmra.mxu0 %v569
        %v652 = vpop.f32.mrf.mxu0
        %v653 = vadd.f32 %v556, %v652
        %v654 = vpop.f32.mrf.mxu0
        %655 = vdwg.mxu0
        %v656 = vmax.f32 %v638, 0.0
        %v657 = vmax.f32 %v643, 0.0
        %v658 = vmax.f32 %v648, 0.0
        %v659 = vmax.f32 %v653, 0.0
        %v660 = vld [vmem:[%s5] sm:$0xff]
        %v661 = vld [vmem:[%s5 + $0x8] sm:$0xff]
        %v662 = vld [vmem:[%s5 + $0x10] sm:$0xff]
        %v663 = vld [vmem:[%s5 + $0x18] sm:$0x3f]
        %v664 = vmul.f32 %v656, %v660
        %v665 = vmul.f32 %v657, %v661
        %v666 = vmul.f32 %v658, %v662
        %v667 = vmul.f32 %v659, %v663
        %v668 = vsel %vm547, %v664, 0.0
        %669 = vadd.xlane.f32.xlu0 %v668
        %v670 = vpop.xlane.xlu0 %669
        %v671 = vsel %vm547, %v665, 0.0
        %672 = vadd.xlane.f32.xlu0 %v671
        %v673 = vpop.xlane.xlu0 %672
        %v674 = vsel %vm547, %v666, 0.0
        %675 = vadd.xlane.f32.xlu0 %v674
        %v676 = vpop.xlane.xlu0 %675
        %vm677 = vcmask 521216
        %v678 = vsel %vm677, %v667, 0.0
        %679 = vadd.xlane.f32.xlu0 %v678
        %v680 = vpop.xlane.xlu0 %679
        %v681 = vld [vmem:[%s6] sm:$0xff]
        %v682 = vld [vmem:[%s6 + $0x8] sm:$0xff]
        %v683 = vld [vmem:[%s6 + $0x10] sm:$0xff]
        %v684 = vld [vmem:[%s6 + $0x18] sm:$0x3f]
        %v685 = vadd.f32 %v670, %v681
        %v686 = vadd.f32 %v673, %v682
        %v687 = vadd.f32 %v676, %v683
        %v688 = vadd.f32 %v680, %v684
        %v689 = vtanh.pop %v685
        %v690 = vtanh.pop %v686
        %v691 = vtanh.pop %v687
        %v692 = vtanh.pop %v688
        %694 = vset.pattern.permute.xlu0 0
        %695 = vperm.xlu0 %694, %v689
        %v696 = vpop.permute.xlu0 %695
        %699 = vset.pattern.permute.xlu0 0
        %700 = vperm.xlu0 %699, %v690
        %v701 = vpop.permute.xlu0 %700
        %704 = vset.pattern.permute.xlu0 0
        %705 = vperm.xlu0 %704, %v691
        %v706 = vpop.permute.xlu0 %705
        %709 = vset.pattern.permute.xlu0 0
        %710 = vperm.xlu0 %709, %v692
        %v711 = vpop.permute.xlu0 %710
        %v713 = vmul.f32 %v696, %v656
        %v714 = vmul.f32 %v701, %v657
        %v715 = vmul.f32 %v706, %v658
        %v716 = vmul.f32 %v711, %v659
        %v717 = vsel %vm547, %v713, 0.0
        %v718 = vsel %vm547, %v714, 0.0
        %v719 = vadd.f32 %v717, %v718
        %v720 = vsel %vm547, %v715, 0.0
        %v721 = vadd.f32 %v719, %v720
        %v722 = vsel %vm677, %v716, 0.0
        %v723 = vadd.f32 %v721, %v722
        %v724 = vrot.slane %v723, 4
        %v725 = vadd.f32 %v723, %v724
        %v726 = vrot.slane %v725, 2
        %v727 = vadd.f32 %v725, %v726
        %v728 = vrot.slane %v727, 1
        %v729 = vadd.f32 %v727, %v728
        %vm730 = vcmask 516096
        %731 = vst.msk [vmem:[%s270] sm:$0x1] %vm730, %v729
        %s732 = sand.u32 %s181, 1
        %s733 = scalar_lea.sflag [#allocation3], %s732
        %s734 = sand.u32 %s181, 1
        %s735 = scalar_lea.vmem [#allocation2], %s734
        // Predicated region
        $region49: #{tpu_custom_call.1} parent=47 // pred_check
          %p736 = pneg %p191
        $region50: #{tpu_custom_call.1} parent=47 // pred_check_branch
          %738 = sbr.rel (%p736) target = $region52
        $region51: #{tpu_custom_call.1} parent=47 // pred_region
          %s740 = ssub.s32 16, 16
          %741 = vsyncadd %s733, %s740
          %s742 = smul.addr %s21, 16
          %s743 = scalar_lea.hbm %s7, %s742
          %s745 = sshll.u32 %s735, 4
          %s746 = int_to_ptr.vmem [resolvable:$true] %s745
          %748 = dma.vmem_to_hbm [thread:$0]  %s746, 16, %s743, %s733
        $region52: #{tpu_custom_call.1} parent=47 // pred_fallthru
          _
      $region48: #{tpu_custom_call.1} parent=5 // pred_fallthru
        _
      %p749 = scmp.le.s32.totalorder 2, %s16
      // Predicated region
      $region53: #{tpu_custom_call.1} parent=5 // pred_check
        %p750 = pneg %p749
      $region54: #{tpu_custom_call.1} parent=5 // pred_check_branch
        %752 = sbr.rel (%p750) target = $region56
      $region55: #{tpu_custom_call.1} parent=5 // pred_region
        %s753 = ssub.s32 %s16, 2
        // Predicated region
        $region57: #{tpu_custom_call.1} parent=55 // pred_check
          %p754 = pneg %p197
        $region58: #{tpu_custom_call.1} parent=55 // pred_check_branch
          %756 = sbr.rel (%p754) target = $region60
        $region59: #{tpu_custom_call.1} parent=55 // pred_region
          %s757 = sand.u32 %s182, 1
          %s758 = scalar_lea.sflag [#allocation3], %s757
          %s759 = sand.u32 %s182, 1
          %s760 = scalar_lea.vmem [#allocation2], %s759
          %761 = dma.done %s758, 16
        $region60: #{tpu_custom_call.1} parent=55 // pred_fallthru
          _
      $region56: #{tpu_custom_call.1} parent=5 // pred_fallthru
        _
    $region6: #{tpu_custom_call.1} parent=1 // loop_footer
      %s20 = sadd.s32 1, %s16
    $region7: #{tpu_custom_call.1} parent=1 // loop_footer_branch
      %15 = sbr.rel target = $region3
    $region8: #{tpu_custom_call.1} parent=1 // loop_exit
      _
    %762 = vsyncpa [#allocation3], 1
    %s763 = scalar_lea.sflag [#allocation3], 1
    %764 = vsyncpa %s763, 1

</llo_original>
